<compile_context>
chip_gen: v5e
topology: v5e:2x2
jax: 0.10.0
libtpu: 0.0.40
codegen_flags: <defaults>
</compile_context>

<pallas_src>
import math
import numpy as np

import jax
import jax.numpy as jnp
from jax.experimental import pallas as pl
from jax.experimental.pallas import tpu as pltpu


def _round_up(x, m):
    return ((x + m - 1) // m) * m


def _lcm(a, b):
    return a * b // math.gcd(a, b)


def _vmem_capacity_bytes():
    try:
        info = pltpu.get_tpu_info()
        cap = getattr(info, "vmem_capacity_bytes", None)
        if cap:
            return int(cap)
    except Exception:
        pass
    return 64 * 1024 * 1024  # conservative (v7x per-core)


# ----------------------------------------------------------------------------
# Shift-index construction (direct numpy port of Modified_shift_gcn.shift)
# ----------------------------------------------------------------------------
def build_shift_index(A, node_num, channels, weight):
    A = np.array(A, copy=True)
    index_array = np.arange(0, node_num * channels).reshape(node_num, channels)
    index_array_copy = np.copy(index_array)
    for i in range(node_num):
        current_A = A[i]
        current_A[i] = 0
        neighbors = np.nonzero(current_A)[0]
        j = 0
        counter_i = i + 1
        while j < channels:
            next_node = counter_i % node_num
            if j < weight:
                j += weight
            elif next_node == i:
                j += weight
                counter_i += 1
            elif next_node in neighbors:
                index_array[i][j:j + weight] = index_array_copy[next_node][j:j + weight]
                j += weight
                counter_i += 1
            else:
                index_array[i][j] = index_array_copy[next_node][j]
                j += 1
                counter_i += 1
    return index_array.flatten().astype(np.int32)


# ----------------------------------------------------------------------------
# Kernel A: dense (rows, C) @ (C, D) bf16 matmul (MXU, f32 accumulate)
#           + packed per-(v, d) BN partial statistics from the f32 accumulator
# ----------------------------------------------------------------------------
def _make_kernel_a(tm, v, vp, d):
    kv = tm // v  # tm is a multiple of v

    def kernel(x_ref, w_ref, z_ref, st_ref):
        acc = jnp.dot(x_ref[...], w_ref[...],
                      preferred_element_type=jnp.float32)          # (tm, d) f32
        z_ref[...] = acc.astype(jnp.bfloat16)                      # bf16 writeback
        zs = acc.reshape(kv, v, d)                                 # group rows by node
        st_ref[0:v, :] = jnp.sum(zs, axis=0)                       # per-(v,d) sum
        st_ref[vp:vp + v, :] = jnp.sum(zs * zs, axis=0)            # per-(v,d) sumsq

    return kernel


def shift_linear_stats(x_g, w_bf16, tm, v, vp, d, vmem_lim):
    rp, c = x_g.shape
    g = rp // tm
    return pl.pallas_call(
        _make_kernel_a(tm, v, vp, d),
        out_shape=(jax.ShapeDtypeStruct((rp, d), jnp.bfloat16),
                   jax.ShapeDtypeStruct((g * 2 * vp, d), jnp.float32)),
        grid=(g,),
        in_specs=[
            pl.BlockSpec((tm, c), lambda i: (i, 0)),
            pl.BlockSpec((c, d), lambda i: (0, 0)),   # tiny, constant block
        ],
        out_specs=(
            pl.BlockSpec((tm, d), lambda i: (i, 0)),
            pl.BlockSpec((2 * vp, d), lambda i: (i, 0)),
        ),
        compiler_params=pltpu.CompilerParams(
            dimension_semantics=("parallel",),
            vmem_limit_bytes=vmem_lim),
    )(x_g, w_bf16)


# ----------------------------------------------------------------------------
# Kernel B: BN affine + residual add + ReLU, already in the final (n,d,t*v)
# layout -> its output is the module output modulo a free reshape.
# ----------------------------------------------------------------------------
def _bn_res_relu_kernel(z_ref, s_ref, b_ref, r_ref, o_ref):
    y = z_ref[...].astype(jnp.float32) * s_ref[...] + b_ref[...] + r_ref[...]
    o_ref[...] = jnp.maximum(y, 0.0)


def bn_residual_relu(zt, scale_f, shift_f, res, db, vmem_lim):
    n, d, tv = zt.shape
    blk = (1, db, tv)
    return pl.pallas_call(
        _bn_res_relu_kernel,
        out_shape=jax.ShapeDtypeStruct((n, d, tv), jnp.float32),
        grid=(d // db, n),
        in_specs=[
            pl.BlockSpec(blk, lambda j, i: (i, j, 0)),   # z (bf16)
            pl.BlockSpec(blk, lambda j, i: (0, j, 0)),   # scale (const over n)
            pl.BlockSpec(blk, lambda j, i: (0, j, 0)),   # shift (const over n)
            pl.BlockSpec(blk, lambda j, i: (i, j, 0)),   # residual (f32)
        ],
        out_specs=pl.BlockSpec(blk, lambda j, i: (i, j, 0)),
        compiler_params=pltpu.CompilerParams(
            dimension_semantics=("parallel", "parallel"),
            vmem_limit_bytes=vmem_lim),
    )(zt, scale_f, shift_f, res)


# ----------------------------------------------------------------------------
# Generation-aware tile selection
# ----------------------------------------------------------------------------
def _choose_tm(rows, c, d, v, vmem_cap):
    q = _lcm(8, v)                               # row tile must align 8 and v
    per_row = 2 * (2 * c + 2 * d) + 8            # double-buffered bf16 in/out
    budget = max(4 * 1024 * 1024, vmem_cap // 3)
    tm = min(budget // per_row, 4096, _round_up(rows, q))
    tm = max(q, (tm // q) * q)
    return tm


def _choose_db(d, tv, vmem_cap):
    db = d
    budget = max(4 * 1024 * 1024, vmem_cap // 2)

    def step_bytes(b):
        return b * tv * (2 * (2 + 4 + 4) + 4 + 4)

    while step_bytes(db) > budget and db % 16 == 0:
        db //= 2
    return db


# ----------------------------------------------------------------------------
# Residual "down" path (1x1 conv + BatchNorm2d, training mode) — plain JAX,
# only used when in_channels != out_channels.
# TODO(synk): fold the down path (and its BN partials) into kernel A.
# ----------------------------------------------------------------------------
def _down_path(x0, params):
    y = jnp.einsum("nctv,dc->ndtv", x0, params["down_w"],
                   precision=jax.lax.Precision.HIGHEST)
    y = y + params["down_b"][None, :, None, None]
    m = jnp.mean(y, axis=(0, 2, 3), keepdims=True)
    s = jnp.var(y, axis=(0, 2, 3), keepdims=True)
    return ((y - m) / jnp.sqrt(s + 1e-5)
            * params["down_gamma"][None, :, None, None]
            + params["down_beta"][None, :, None, None])


# ----------------------------------------------------------------------------
# Full forward pass
# ----------------------------------------------------------------------------
def modified_shift_gcn_forward(x0, params):
    n, c, t, v = x0.shape
    d = params["lin_w"].shape[1]
    N = n * t
    rows = N * v
    tv = t * v

    vmem_cap = _vmem_capacity_bytes()
    vmem_lim = int(min(max(vmem_cap - 4 * 1024 * 1024, 32 * 1024 * 1024),
                       100 * 1024 * 1024))

    # -- pass 1 (XLA, fuses into one copy): transpose + shift_in column gather
    #    + Feature_Mask multiply (f32) + bf16 cast -> (N*V, C)
    mask = jnp.tanh(params["fm"]) + 1.0                              # (v, c)
    x_perm = jnp.transpose(x0, (0, 2, 3, 1)).reshape(N, v * c)
    x_gath = jnp.take(x_perm, params["shift_in"], axis=1).reshape(N, v, c)
    x_g = (x_gath * mask[None]).reshape(rows, c).astype(jnp.bfloat16)

    tm = _choose_tm(rows, c, d, v, vmem_cap)
    g = -(-rows // tm)
    if g > 1 and g % 2 == 1:
        g += 1                       # even step count for v7x megacore balance
    rp = g * tm
    if rp != rows:
        x_g = jnp.pad(x_g, ((0, rp - rows), (0, 0)))   # zero rows: stats-neutral

    # -- kernel A: dense bf16 matmul + packed BN partial statistics
    vp = _round_up(v, 8)
    w_bf16 = params["lin_w"].astype(jnp.bfloat16)
    z, stats = shift_linear_stats(x_g, w_bf16, tm, v, vp, d, vmem_lim)

    # -- BN (training-mode) statistics in pre-shift (v, d) feature space
    st = stats.reshape(g, 2 * vp, d)
    mean = jnp.sum(st[:, :v, :], axis=0) / N                         # (v, d)
    ex2 = jnp.sum(st[:, vp:vp + v, :], axis=0) / N
    var = jnp.maximum(ex2 - mean * mean, 0.0)
    inv = jax.lax.rsqrt(var + 1e-5)
    # gather per post-shift feature (shift_out preserves the channel index);
    # Linear_bias is a per-feature constant -> cancels under batch-stat BN.
    mean_q = mean.reshape(v * d)[params["shift_out"]]
    inv_q = inv.reshape(v * d)[params["shift_out"]]
    scale_q = params["bn_gamma"] * inv_q
    shift_q = params["bn_beta"] - scale_q * mean_q
    # lay scale/shift out in kernel B's final (d, t*v) layout
    scale_f = jnp.broadcast_to(scale_q.reshape(v, d).T[:, None, :],
                               (d, t, v)).reshape(1, d, tv)
    shift_f = jnp.broadcast_to(shift_q.reshape(v, d).T[:, None, :],
                               (d, t, v)).reshape(1, d, tv)

    # -- shift_out gather + layout change straight to the FINAL (n, d, t*v)
    # TODO(synk): this gather+transpose over bf16 z could be folded into
    # kernel B via a scalar-prefetched per-(d,v) source map if it dominates.
    zg = jnp.take(z[:rows].reshape(N, v * d), params["shift_out"], axis=1)
    zt = zg.reshape(n, t, v, d).transpose(0, 3, 1, 2).reshape(n, d, tv)

    # -- residual: free reshape view of x0 when c == d (no transpose, no copy)
    if c == d:
        res = x0.reshape(n, c, tv)
    else:
        res = _down_path(x0, params).reshape(n, d, tv)

    # -- kernel B: BN affine + residual + ReLU, output already in final layout
    db = _choose_db(d, tv, vmem_cap)
    out = bn_residual_relu(zt, scale_f, shift_f, res, db, vmem_lim)
    return out.reshape(n, d, t, v)


# ----------------------------------------------------------------------------
# Pure-JAX reference (mirrors the PyTorch forward line by line)
# ----------------------------------------------------------------------------
def reference_forward(x0, params):
    n, c, t, v = x0.shape
    d = params["lin_w"].shape[1]
    x = jnp.transpose(x0, (0, 2, 3, 1)).reshape(n * t, v * c)
    x = x[:, params["shift_in"]]
    x = x.reshape(n * t, v, c)
    x = x * (jnp.tanh(params["fm"])[None, :, :] + 1.0)
    x = jnp.einsum("nwc,cd->nwd", x, params["lin_w"],
                   precision=jax.lax.Precision.HIGHEST)
    x = x + params["lin_b"][None, :, :]
    x = x.reshape(n * t, -1)
    x = x[:, params["shift_out"]]
    mean = jnp.mean(x, axis=0)
    var = jnp.var(x, axis=0)
    x = (x - mean) / jnp.sqrt(var + 1e-5) * params["bn_gamma"] + params["bn_beta"]
    x = x.reshape(n, t, v, d).transpose(0, 3, 1, 2)
    res = x0 if c == d else _down_path(x0, params)
    return jnp.maximum(x + res, 0.0)


# ----------------------------------------------------------------------------
# Deterministic parameter construction (shapes from the module's __init__)
# ----------------------------------------------------------------------------
def init_params(key, in_channels, out_channels, A, weight=2):
    node = A.shape[1]
    A_sum = np.sum(np.asarray(A, dtype=np.float32), 0)
    A_sum[A_sum == 0] = 0
    A_sum[A_sum != 0] = 1
    k = jax.random.split(key, 8)
    params = {
        "lin_w": jax.random.normal(k[0], (in_channels, out_channels), jnp.float32)
                 * math.sqrt(1.0 / out_channels),
        "lin_b": 0.05 * jax.random.normal(k[1], (1, out_channels), jnp.float32),
        "fm": 0.1 * jax.random.normal(k[2], (node, in_channels), jnp.float32),
        "bn_gamma": 1.0 + 0.1 * jax.random.normal(k[3], (node * out_channels,), jnp.float32),
        "bn_beta": 0.1 * jax.random.normal(k[4], (node * out_channels,), jnp.float32),
        "shift_in": jnp.asarray(build_shift_index(A_sum, node, in_channels, weight)),
        "shift_out": jnp.asarray(build_shift_index(A_sum, node, out_channels, weight)),
    }
    if in_channels != out_channels:
        params["down_w"] = (jax.random.normal(k[5], (out_channels, in_channels), jnp.float32)
                            * math.sqrt(2.0 / out_channels))
        params["down_b"] = jnp.zeros((out_channels,), jnp.float32)
        params["down_gamma"] = jnp.ones((out_channels,), jnp.float32)
        params["down_beta"] = jnp.zeros((out_channels,), jnp.float32)
    return params


if __name__ == "__main__":
    # small deterministic demo: batch=2, channels=16->16, time=8, nodes=8
    n, in_c, out_c, t, node = 2, 16, 16, 8, 8

    # adjacency with num_subset=3: self-loops + ring (in/out) edges
    A = np.zeros((3, node, node), dtype=np.float32)
    A[0] = np.eye(node)
    for i in range(node):
        A[1, i, (i + 1) % node] = 1.0
        A[2, i, (i - 1) % node] = 1.0

    key = jax.random.PRNGKey(0)
    kx, kp = jax.random.split(key)
    params = init_params(kp, in_c, out_c, A, weight=2)
    x0 = jax.random.normal(kx, (n, in_c, t, node), jnp.float32)

    fwd = jax.jit(modified_shift_gcn_forward)
    out = jax.block_until_ready(fwd(x0, params))
    ref = jax.block_until_ready(reference_forward(x0, params))

    assert out.shape == (n, out_c, t, node), out.shape
    np.testing.assert_allclose(np.asarray(out), np.asarray(ref), rtol=1e-2, atol=1e-2)
    print("KERNEL_OK")
</pallas_src>

<mosaic_0001>
module attributes {stable_mosaic.version = 11 : i64} {
  func.func @kernel(%arg0: i32, %arg1: memref<128x16xbf16, #tpu.memory_space<vmem>>, %arg2: memref<16x16xbf16, #tpu.memory_space<vmem>>, %arg3: memref<128x16xbf16, #tpu.memory_space<vmem>>, %arg4: memref<16x16xf32, #tpu.memory_space<vmem>>) attributes {dimension_semantics = [#tpu.dimension_semantics<parallel>], iteration_bounds = array<i64: 1>, scalar_prefetch = 0 : i64, scratch_operands = 0 : i64, tpu.core_type = #tpu.core_type<tc>, window_params = [{transform_indices = @transform_0, window_bounds = array<i64: 128, 16>}, {pipeline_mode = #tpu.pipeline_mode<synchronous>, transform_indices = @transform_1, window_bounds = array<i64: 16, 16>}, {transform_indices = @transform_2, window_bounds = array<i64: 128, 16>}, {transform_indices = @transform_3, window_bounds = array<i64: 16, 16>}]} {
    %c0 = arith.constant 0 : index
    %c0_0 = arith.constant 0 : index
    %0 = vector.load %arg1[%c0, %c0_0] : memref<128x16xbf16, #tpu.memory_space<vmem>>, vector<128x16xbf16>
    %c0_1 = arith.constant 0 : index
    %c0_2 = arith.constant 0 : index
    %1 = vector.load %arg2[%c0_1, %c0_2] : memref<16x16xbf16, #tpu.memory_space<vmem>>, vector<16x16xbf16>
    %cst = arith.constant dense<0.000000e+00> : vector<128x16xf32>
    %2 = tpu.matmul %0, %1, %cst {dimension_numbers = #tpu.dot_dimension_numbers<[1], [0], [0], [1], [0, 0, 1, 1], [], []>} : vector<128x16xbf16>, vector<16x16xbf16>, vector<128x16xf32> -> vector<128x16xf32>
    %3 = arith.truncf %2 : vector<128x16xf32> to vector<128x16xbf16>
    %c0_3 = arith.constant 0 : index
    %c0_4 = arith.constant 0 : index
    %4 = vector.load %arg3[%c0_3, %c0_4] : memref<128x16xbf16, #tpu.memory_space<vmem>>, vector<128x16xbf16>
    tpu.vector_store %arg3[%c0_3, %c0_4], %3 {strides = array<i32>} : memref<128x16xbf16, #tpu.memory_space<vmem>>, vector<128x16xbf16>,
    %5 = vector.shape_cast %2 : vector<128x16xf32> to vector<16x8x16xf32>
    %cst_5 = arith.constant dense<0.000000e+00> : vector<8x16xf32>
    %6 = vector.multi_reduction <add>, %5, %cst_5 [0] : vector<16x8x16xf32> to vector<8x16xf32>
    %c0_6 = arith.constant 0 : index
    %c0_7 = arith.constant 0 : index
    %7 = vector.load %arg4[%c0_6, %c0_7] : memref<16x16xf32, #tpu.memory_space<vmem>>, vector<8x16xf32>
    tpu.vector_store %arg4[%c0_6, %c0_7], %6 {strides = array<i32>} : memref<16x16xf32, #tpu.memory_space<vmem>>, vector<8x16xf32>,
    %8 = arith.mulf %5, %5 : vector<16x8x16xf32>
    %cst_8 = arith.constant dense<0.000000e+00> : vector<8x16xf32>
    %9 = vector.multi_reduction <add>, %8, %cst_8 [0] : vector<16x8x16xf32> to vector<8x16xf32>
    %c8 = arith.constant 8 : index
    %c0_9 = arith.constant 0 : index
    %10 = vector.load %arg4[%c8, %c0_9] : memref<16x16xf32, #tpu.memory_space<vmem>>, vector<8x16xf32>
    tpu.vector_store %arg4[%c8, %c0_9], %9 {strides = array<i32>} : memref<16x16xf32, #tpu.memory_space<vmem>>, vector<8x16xf32>,
    return
  }
  func.func @transform_0(%arg0: i32) -> (i32, i32) {
    %c0_i32 = arith.constant 0 : i32
    %c0_i32_0 = arith.constant 0 : i32
    return %arg0, %c0_i32 : i32, i32
  }
  func.func @transform_1(%arg0: i32) -> (i32, i32) {
    %c0_i32 = arith.constant 0 : i32
    %c0_i32_0 = arith.constant 0 : i32
    %c0_i32_1 = arith.constant 0 : i32
    return %c0_i32, %c0_i32_0 : i32, i32
  }
  func.func @transform_2(%arg0: i32) -> (i32, i32) {
    %c0_i32 = arith.constant 0 : i32
    %c0_i32_0 = arith.constant 0 : i32
    return %arg0, %c0_i32 : i32, i32
  }
  func.func @transform_3(%arg0: i32) -> (i32, i32) {
    %c0_i32 = arith.constant 0 : i32
    %c0_i32_0 = arith.constant 0 : i32
    return %arg0, %c0_i32 : i32, i32
  }
}

module attributes {stable_mosaic.version = 11 : i64} {
  func.func @_bn_res_relu_kernel(%arg0: i32, %arg1: i32, %arg2: memref<1x16x64xbf16, #tpu.memory_space<vmem>>, %arg3: memref<1x16x64xf32, #tpu.memory_space<vmem>>, %arg4: memref<1x16x64xf32, #tpu.memory_space<vmem>>, %arg5: memref<1x16x64xf32, #tpu.memory_space<vmem>>, %arg6: memref<1x16x64xf32, #tpu.memory_space<vmem>>) attributes {dimension_semantics = [#tpu.dimension_semantics<parallel>, #tpu.dimension_semantics<parallel>], iteration_bounds = array<i64: 1, 2>, scalar_prefetch = 0 : i64, scratch_operands = 0 : i64, tpu.core_type = #tpu.core_type<tc>, window_params = [{transform_indices = @transform_0, window_bounds = array<i64: 1, 16, 64>}, {transform_indices = @transform_1, window_bounds = array<i64: 1, 16, 64>}, {transform_indices = @transform_2, window_bounds = array<i64: 1, 16, 64>}, {transform_indices = @transform_3, window_bounds = array<i64: 1, 16, 64>}, {transform_indices = @transform_4, window_bounds = array<i64: 1, 16, 64>}]} {
    %c0 = arith.constant 0 : index
    %c0_0 = arith.constant 0 : index
    %c0_1 = arith.constant 0 : index
    %0 = vector.load %arg2[%c0, %c0_0, %c0_1] : memref<1x16x64xbf16, #tpu.memory_space<vmem>>, vector<1x16x64xbf16>
    %1 = arith.extf %0 : vector<1x16x64xbf16> to vector<1x16x64xf32>
    %c0_2 = arith.constant 0 : index
    %c0_3 = arith.constant 0 : index
    %c0_4 = arith.constant 0 : index
    %2 = vector.load %arg3[%c0_2, %c0_3, %c0_4] : memref<1x16x64xf32, #tpu.memory_space<vmem>>, vector<1x16x64xf32>
    %3 = arith.mulf %1, %2 : vector<1x16x64xf32>
    %c0_5 = arith.constant 0 : index
    %c0_6 = arith.constant 0 : index
    %c0_7 = arith.constant 0 : index
    %4 = vector.load %arg4[%c0_5, %c0_6, %c0_7] : memref<1x16x64xf32, #tpu.memory_space<vmem>>, vector<1x16x64xf32>
    %5 = arith.addf %3, %4 : vector<1x16x64xf32>
    %c0_8 = arith.constant 0 : index
    %c0_9 = arith.constant 0 : index
    %c0_10 = arith.constant 0 : index
    %6 = vector.load %arg5[%c0_8, %c0_9, %c0_10] : memref<1x16x64xf32, #tpu.memory_space<vmem>>, vector<1x16x64xf32>
    %7 = arith.addf %5, %6 : vector<1x16x64xf32>
    %cst = arith.constant 0.000000e+00 : f32
    %8 = vector.broadcast %cst : f32 to vector<1x16x64xf32>
    %9 = arith.maximumf %7, %8 : vector<1x16x64xf32>
    %c0_11 = arith.constant 0 : index
    %c0_12 = arith.constant 0 : index
    %c0_13 = arith.constant 0 : index
    %10 = vector.load %arg6[%c0_11, %c0_12, %c0_13] : memref<1x16x64xf32, #tpu.memory_space<vmem>>, vector<1x16x64xf32>
    tpu.vector_store %arg6[%c0_11, %c0_12, %c0_13], %9 {strides = array<i32>} : memref<1x16x64xf32, #tpu.memory_space<vmem>>, vector<1x16x64xf32>,
    return
  }
  func.func @transform_0(%arg0: i32, %arg1: i32) -> (i32, i32, i32) {
    %c0_i32 = arith.constant 0 : i32
    %c0_i32_0 = arith.constant 0 : i32
    return %arg1, %arg0, %c0_i32 : i32, i32, i32
  }
  func.func @transform_1(%arg0: i32, %arg1: i32) -> (i32, i32, i32) {
    %c0_i32 = arith.constant 0 : i32
    %c0_i32_0 = arith.constant 0 : i32
    %c0_i32_1 = arith.constant 0 : i32
    return %c0_i32, %arg0, %c0_i32_0 : i32, i32, i32
  }
  func.func @transform_2(%arg0: i32, %arg1: i32) -> (i32, i32, i32) {
    %c0_i32 = arith.constant 0 : i32
    %c0_i32_0 = arith.constant 0 : i32
    %c0_i32_1 = arith.constant 0 : i32
    return %c0_i32, %arg0, %c0_i32_0 : i32, i32, i32
  }
  func.func @transform_3(%arg0: i32, %arg1: i32) -> (i32, i32, i32) {
    %c0_i32 = arith.constant 0 : i32
    %c0_i32_0 = arith.constant 0 : i32
    return %arg1, %arg0, %c0_i32 : i32, i32, i32
  }
  func.func @transform_4(%arg0: i32, %arg1: i32) -> (i32, i32, i32) {
    %c0_i32 = arith.constant 0 : i32
    %c0_i32_0 = arith.constant 0 : i32
    return %arg1, %arg0, %c0_i32 : i32, i32, i32
  }
}

</mosaic_0001>

<llo_original>
// kernel: modified_shift_gcn_forward.2
$region0: #{modified_shift_gcn_forward.2}
  #allocation0 [shape = 'u32[]', space=smem, size = 0x4, offset = 0x4, fixed_abs, tag = 'smem constant byte address 0x4 - core index']
  #allocation1 [shape = 'u32[72,128]{1,0:T(1,128)}', space=vmem, size = 0x9000, scoped, tag = 'internal scratch']
  %s0 = inlined_call_operand.vmem [shape: bf16[128,16], index: 0, kind: input, shape index: {}]
  %s1 = inlined_call_operand.vmem [shape: bf16[16,16], index: 1, kind: input, shape index: {}]
  %s2 = inlined_call_operand.vmem [shape: bf16[128,16], index: 2, kind: output, shape index: {0}]
  %s3 = inlined_call_operand.vmem [shape: f32[16,16], index: 3, kind: output, shape index: {1}]
  %4 = xla_tuple %s2, %s3
  %s5 = sld [smem:[#allocation0]]
  $region26: #{modified_shift_gcn_forward.2} parent=0
    _
  %s7 = ssub.s32 1, %s5
  %s8 = scalar_select 0, %s7, %s5
  // Predicated region
  $region2: #{modified_shift_gcn_forward.2} parent=0 // pred_check
    _
  $region3: #{modified_shift_gcn_forward.2} parent=0 // pred_check_branch
    %10 = sbr.rel (0) target = $region5
  $region4: #{modified_shift_gcn_forward.2} parent=0 // pred_region
    _
  $region5: #{modified_shift_gcn_forward.2} parent=0 // pred_fallthru
    _
  // Predicated region
  $region6: #{modified_shift_gcn_forward.2} parent=0 // pred_check
    _
  $region7: #{modified_shift_gcn_forward.2} parent=0 // pred_check_branch
    %12 = sbr.rel (0) target = $region9
  $region8: #{modified_shift_gcn_forward.2} parent=0 // pred_region
    _
  $region9: #{modified_shift_gcn_forward.2} parent=0 // pred_fallthru
    _
  %v14 = vld [vmem:[%s0] sm:$0xf]
  %v15 = vld [vmem:[%s0 + $0x4] sm:$0xf]
  %v16 = vld [vmem:[%s0 + $0x8] sm:$0xf]
  %v17 = vld [vmem:[%s0 + $0xc] sm:$0xf]
  %v18 = vld [vmem:[%s0 + $0x10] sm:$0xf]
  %v19 = vld [vmem:[%s0 + $0x14] sm:$0xf]
  %v20 = vld [vmem:[%s0 + $0x18] sm:$0xf]
  %v21 = vld [vmem:[%s0 + $0x1c] sm:$0xf]
  %v22 = vld [vmem:[%s0 + $0x20] sm:$0xf]
  %v23 = vld [vmem:[%s0 + $0x24] sm:$0xf]
  %v24 = vld [vmem:[%s0 + $0x28] sm:$0xf]
  %v25 = vld [vmem:[%s0 + $0x2c] sm:$0xf]
  %v26 = vld [vmem:[%s0 + $0x30] sm:$0xf]
  %v27 = vld [vmem:[%s0 + $0x34] sm:$0xf]
  %v28 = vld [vmem:[%s0 + $0x38] sm:$0xf]
  %v29 = vld [vmem:[%s0 + $0x3c] sm:$0xf]
  %v30 = vld [vmem:[%s1] sm:$0xf]
  %v31 = vld [vmem:[%s1 + $0x4] sm:$0xf]
  %v48 = vunpack.c.l.b16 %v14
  %v49 = vunpack.c.l.b16 %v15
  %v50 = vunpack.c.l.b16 %v16
  %v51 = vunpack.c.l.b16 %v17
  %v52 = vunpack.c.l.b16 %v18
  %v53 = vunpack.c.l.b16 %v19
  %v54 = vunpack.c.l.b16 %v20
  %v55 = vunpack.c.l.b16 %v21
  %v56 = vunpack.c.l.b16 %v22
  %v57 = vunpack.c.l.b16 %v23
  %v58 = vunpack.c.l.b16 %v24
  %v59 = vunpack.c.l.b16 %v25
  %v60 = vunpack.c.l.b16 %v26
  %v61 = vunpack.c.l.b16 %v27
  %v62 = vunpack.c.l.b16 %v28
  %v63 = vunpack.c.l.b16 %v29
  %v64 = vpack.c.b16 %v49, %v48
  %v65 = vpack.c.b16 %v51, %v50
  %v66 = vpack.c.b16 %v53, %v52
  %v67 = vpack.c.b16 %v55, %v54
  %v68 = vpack.c.b16 %v57, %v56
  %v69 = vpack.c.b16 %v59, %v58
  %v70 = vpack.c.b16 %v61, %v60
  %v71 = vpack.c.b16 %v63, %v62
  %v74 = vunpack.c.l.b16 %v30
  %v75 = vunpack.c.l.b16 %v31
  %v76 = vpack.c.b16 %v75, %v74
  %vm78 = vcmask 130048
  %v80 = vsel %vm78, %v64, 0
  %v83 = vsel %vm78, %v65, 0
  %v86 = vsel %vm78, %v66, 0
  %v89 = vsel %vm78, %v67, 0
  %v92 = vsel %vm78, %v68, 0
  %v95 = vsel %vm78, %v69, 0
  %v98 = vsel %vm78, %v70, 0
  %v101 = vsel %vm78, %v71, 0
  %103 = vmatpush.bf16.msra.mxu0 0
  %104 = vmatpush.bf16.msra.mxu0 0
  %105 = vmatpush.bf16.msra.mxu0 0
  %106 = vmatpush.bf16.msra.mxu0 0
  %107 = vmatpush.bf16.msra.mxu0 0
  %108 = vmatpush.bf16.msra.mxu0 0
  %109 = vmatpush.bf16.msra.mxu0 0
  %110 = vmatpush.bf16.msra.mxu0 %v76
  %111 = vmatmul.bf16.gmra.mxu0 %v80
  %v112 = vpop.f32.mrf.mxu0
  %v113 = vadd.f32 0.0, %v112
  %v114 = vpop.f32.mrf.mxu0
  %v115 = vadd.f32 0.0, %v114
  %116 = vmatmul.bf16.gmra.mxu0 %v83
  %v117 = vpop.f32.mrf.mxu0
  %v118 = vadd.f32 0.0, %v117
  %v119 = vpop.f32.mrf.mxu0
  %v120 = vadd.f32 0.0, %v119
  %121 = vmatmul.bf16.gmra.mxu0 %v86
  %v122 = vpop.f32.mrf.mxu0
  %v123 = vadd.f32 0.0, %v122
  %v124 = vpop.f32.mrf.mxu0
  %v125 = vadd.f32 0.0, %v124
  %126 = vmatmul.bf16.gmra.mxu0 %v89
  %v127 = vpop.f32.mrf.mxu0
  %v128 = vadd.f32 0.0, %v127
  %v129 = vpop.f32.mrf.mxu0
  %v130 = vadd.f32 0.0, %v129
  %131 = vmatmul.bf16.gmra.mxu0 %v92
  %v132 = vpop.f32.mrf.mxu0
  %v133 = vadd.f32 0.0, %v132
  %v134 = vpop.f32.mrf.mxu0
  %v135 = vadd.f32 0.0, %v134
  %136 = vmatmul.bf16.gmra.mxu0 %v95
  %v137 = vpop.f32.mrf.mxu0
  %v138 = vadd.f32 0.0, %v137
  %v139 = vpop.f32.mrf.mxu0
  %v140 = vadd.f32 0.0, %v139
  %141 = vmatmul.bf16.gmra.mxu0 %v98
  %v142 = vpop.f32.mrf.mxu0
  %v143 = vadd.f32 0.0, %v142
  %v144 = vpop.f32.mrf.mxu0
  %v145 = vadd.f32 0.0, %v144
  %146 = vmatmul.bf16.gmra.mxu0 %v101
  %v147 = vpop.f32.mrf.mxu0
  %v148 = vadd.f32 0.0, %v147
  %v149 = vpop.f32.mrf.mxu0
  %v150 = vadd.f32 0.0, %v149
  %151 = vdwg.mxu0
  %v152 = vpack.c.bf16 %v113, %v113
  %v153 = vpack.c.bf16 %v115, %v115
  %v154 = vpack.c.bf16 %v118, %v118
  %v155 = vpack.c.bf16 %v120, %v120
  %v156 = vpack.c.bf16 %v123, %v123
  %v157 = vpack.c.bf16 %v125, %v125
  %v158 = vpack.c.bf16 %v128, %v128
  %v159 = vpack.c.bf16 %v130, %v130
  %v160 = vpack.c.bf16 %v133, %v133
  %v161 = vpack.c.bf16 %v135, %v135
  %v162 = vpack.c.bf16 %v138, %v138
  %v163 = vpack.c.bf16 %v140, %v140
  %v164 = vpack.c.bf16 %v143, %v143
  %v165 = vpack.c.bf16 %v145, %v145
  %v166 = vpack.c.bf16 %v148, %v148
  %v167 = vpack.c.bf16 %v150, %v150
  %vm168 = vcmask 125952
  %169 = vst.msk [vmem:[%s2] sm:$0xf] %vm168, %v152
  %170 = vst.msk [vmem:[%s2 + $0x4] sm:$0xf] %vm168, %v153
  %171 = vst.msk [vmem:[%s2 + $0x8] sm:$0xf] %vm168, %v154
  %172 = vst.msk [vmem:[%s2 + $0xc] sm:$0xf] %vm168, %v155
  %173 = vst.msk [vmem:[%s2 + $0x10] sm:$0xf] %vm168, %v156
  %174 = vst.msk [vmem:[%s2 + $0x14] sm:$0xf] %vm168, %v157
  %175 = vst.msk [vmem:[%s2 + $0x18] sm:$0xf] %vm168, %v158
  %176 = vst.msk [vmem:[%s2 + $0x1c] sm:$0xf] %vm168, %v159
  %177 = vst.msk [vmem:[%s2 + $0x20] sm:$0xf] %vm168, %v160
  %178 = vst.msk [vmem:[%s2 + $0x24] sm:$0xf] %vm168, %v161
  %179 = vst.msk [vmem:[%s2 + $0x28] sm:$0xf] %vm168, %v162
  %180 = vst.msk [vmem:[%s2 + $0x2c] sm:$0xf] %vm168, %v163
  %181 = vst.msk [vmem:[%s2 + $0x30] sm:$0xf] %vm168, %v164
  %182 = vst.msk [vmem:[%s2 + $0x34] sm:$0xf] %vm168, %v165
  %183 = vst.msk [vmem:[%s2 + $0x38] sm:$0xf] %vm168, %v166
  %184 = vst.msk [vmem:[%s2 + $0x3c] sm:$0xf] %vm168, %v167
  %v185 = vsel %vm78, %v113, 0.0
  %v186 = vsel %vm78, %v115, 0.0
  %v187 = vadd.f32 %v185, %v186
  %v188 = vsel %vm78, %v118, 0.0
  %v189 = vadd.f32 %v187, %v188
  %v190 = vsel %vm78, %v120, 0.0
  %v191 = vadd.f32 %v189, %v190
  %v192 = vsel %vm78, %v123, 0.0
  %v193 = vadd.f32 %v191, %v192
  %v194 = vsel %vm78, %v125, 0.0
  %v195 = vadd.f32 %v193, %v194
  %v196 = vsel %vm78, %v128, 0.0
  %v197 = vadd.f32 %v195, %v196
  %v198 = vsel %vm78, %v130, 0.0
  %v199 = vadd.f32 %v197, %v198
  %v200 = vsel %vm78, %v133, 0.0
  %v201 = vadd.f32 %v199, %v200
  %v202 = vsel %vm78, %v135, 0.0
  %v203 = vadd.f32 %v201, %v202
  %v204 = vsel %vm78, %v138, 0.0
  %v205 = vadd.f32 %v203, %v204
  %v206 = vsel %vm78, %v140, 0.0
  %v207 = vadd.f32 %v205, %v206
  %v208 = vsel %vm78, %v143, 0.0
  %v209 = vadd.f32 %v207, %v208
  %v210 = vsel %vm78, %v145, 0.0
  %v211 = vadd.f32 %v209, %v210
  %v212 = vsel %vm78, %v148, 0.0
  %v213 = vadd.f32 %v211, %v212
  %v214 = vsel %vm78, %v150, 0.0
  %v215 = vadd.f32 %v213, %v214
  %216 = vst.msk [vmem:[%s3] sm:$0xff] %vm78, %v215
  %v217 = vmul.f32 %v113, %v113
  %v218 = vmul.f32 %v115, %v115
  %v219 = vmul.f32 %v118, %v118
  %v220 = vmul.f32 %v120, %v120
  %v221 = vmul.f32 %v123, %v123
  %v222 = vmul.f32 %v125, %v125
  %v223 = vmul.f32 %v128, %v128
  %v224 = vmul.f32 %v130, %v130
  %v225 = vmul.f32 %v133, %v133
  %v226 = vmul.f32 %v135, %v135
  %v227 = vmul.f32 %v138, %v138
  %v228 = vmul.f32 %v140, %v140
  %v229 = vmul.f32 %v143, %v143
  %v230 = vmul.f32 %v145, %v145
  %v231 = vmul.f32 %v148, %v148
  %v232 = vmul.f32 %v150, %v150
  %v233 = vsel %vm78, %v217, 0.0
  %v234 = vsel %vm78, %v218, 0.0
  %v235 = vadd.f32 %v233, %v234
  %v236 = vsel %vm78, %v219, 0.0
  %v237 = vadd.f32 %v235, %v236
  %v238 = vsel %vm78, %v220, 0.0
  %v239 = vadd.f32 %v237, %v238
  %v240 = vsel %vm78, %v221, 0.0
  %v241 = vadd.f32 %v239, %v240
  %v242 = vsel %vm78, %v222, 0.0
  %v243 = vadd.f32 %v241, %v242
  %v244 = vsel %vm78, %v223, 0.0
  %v245 = vadd.f32 %v243, %v244
  %v246 = vsel %vm78, %v224, 0.0
  %v247 = vadd.f32 %v245, %v246
  %v248 = vsel %vm78, %v225, 0.0
  %v249 = vadd.f32 %v247, %v248
  %v250 = vsel %vm78, %v226, 0.0
  %v251 = vadd.f32 %v249, %v250
  %v252 = vsel %vm78, %v227, 0.0
  %v253 = vadd.f32 %v251, %v252
  %v254 = vsel %vm78, %v228, 0.0
  %v255 = vadd.f32 %v253, %v254
  %v256 = vsel %vm78, %v229, 0.0
  %v257 = vadd.f32 %v255, %v256
  %v258 = vsel %vm78, %v230, 0.0
  %v259 = vadd.f32 %v257, %v258
  %v260 = vsel %vm78, %v231, 0.0
  %v261 = vadd.f32 %v259, %v260
  %v262 = vsel %vm78, %v232, 0.0
  %v263 = vadd.f32 %v261, %v262
  %264 = vst.msk [vmem:[%s3 + $0x8] sm:$0xff] %vm78, %v263
  // Predicated region
  $region10: #{modified_shift_gcn_forward.2} parent=0 // pred_check
    _
  $region11: #{modified_shift_gcn_forward.2} parent=0 // pred_check_branch
    %266 = sbr.rel (0) target = $region13
  $region12: #{modified_shift_gcn_forward.2} parent=0 // pred_region
    _
  $region13: #{modified_shift_gcn_forward.2} parent=0 // pred_fallthru
    _
  // Predicated region
  $region14: #{modified_shift_gcn_forward.2} parent=0 // pred_check
    _
  $region15: #{modified_shift_gcn_forward.2} parent=0 // pred_check_branch
    %268 = sbr.rel (0) target = $region17
  $region16: #{modified_shift_gcn_forward.2} parent=0 // pred_region
    _
  $region17: #{modified_shift_gcn_forward.2} parent=0 // pred_fallthru
    _
  // Predicated region
  $region18: #{modified_shift_gcn_forward.2} parent=0 // pred_check
    _
  $region19: #{modified_shift_gcn_forward.2} parent=0 // pred_check_branch
    %270 = sbr.rel (0) target = $region21
  $region20: #{modified_shift_gcn_forward.2} parent=0 // pred_region
    _
  $region21: #{modified_shift_gcn_forward.2} parent=0 // pred_fallthru
    _
  // Predicated region
  $region22: #{modified_shift_gcn_forward.2} parent=0 // pred_check
    _
  $region23: #{modified_shift_gcn_forward.2} parent=0 // pred_check_branch
    %272 = sbr.rel (0) target = $region25
  $region24: #{modified_shift_gcn_forward.2} parent=0 // pred_region
    _
  $region25: #{modified_shift_gcn_forward.2} parent=0 // pred_fallthru
    _

// kernel: modified_shift_gcn_forward.3
$region0: #{modified_shift_gcn_forward.3}
  #allocation0 [shape = 'u32[]', space=smem, size = 0x4, offset = 0x4, fixed_abs, tag = 'smem constant byte address 0x4 - core index']
  #allocation1 [shape = 'u32[72,128]{1,0:T(1,128)}', space=vmem, size = 0x9000, scoped, tag = 'internal scratch']
  %s0 = inlined_call_operand.vmem [shape: bf16[2,16,64], index: 0, kind: input, shape index: {}]
  %s1 = inlined_call_operand.vmem [shape: f32[1,16,64], index: 1, kind: input, shape index: {}]
  %s2 = inlined_call_operand.vmem [shape: f32[1,16,64], index: 2, kind: input, shape index: {}]
  %s3 = inlined_call_operand.vmem [shape: f32[2,16,64], index: 3, kind: input, shape index: {}]
  %s4 = inlined_call_operand.vmem [shape: f32[2,16,64], index: 4, kind: output, shape index: {}]
  %s5 = sld [smem:[#allocation0]]
  $region49: #{modified_shift_gcn_forward.3} parent=0
    _
  %s7 = ssub.s32 1, %s5
  %s8 = scalar_select 0, %s7, %s5
  loop: start=0, step=1, limit=4
  $region2: #{modified_shift_gcn_forward.3} parent=0 // loop_pre_header
    _
  $region3: #{modified_shift_gcn_forward.3} parent=0 // loop_header
    %s10 = sphi 0, %s14
    %p11 = scmp.ge.s32.totalorder %s10, 4
    %s17 = sphi 0, %s29
    %s18 = sphi 0, %s25
    %s19 = sphi 0, %s17
    %s20 = sphi 0, %s18
    %s21 = sphi 0, %s19
    %s22 = sphi 0, %s20
    %s34 = sphi 0, %s36
    %s37 = sphi 0, %s34
    %s38 = sphi 0, %s37
    %s54 = sphi 0, %s38
    %s60 = sphi 0, %s62
    %s63 = sphi 0, %s60
    %s64 = sphi 0, %s63
    %s80 = sphi 0, %s64
    %s86 = sphi 0, %s88
    %s89 = sphi 0, %s86
    %s90 = sphi 0, %s89
    %s106 = sphi 0, %s90
    %s114 = sphi 0, %s116
    %s117 = sphi 0, %s114
    %s118 = sphi 0, %s117
    %s134 = sphi 0, %s118
    %s142 = sphi 0, %s144
    %s145 = sphi 0, %s142
    %s146 = sphi 0, %s145
    %s162 = sphi 0, %s146
  $region4: #{modified_shift_gcn_forward.3} parent=0 // loop_header_branch
    %13 = sbr.rel (%p11) target = $region8
  $region5: #{modified_shift_gcn_forward.3} parent=0 // loop_body
    %s15 = ssub.s32 %s10, 1
    %s16 = ssub.s32 %s10, 2
    %s23 = sadd.s32 1, %s18
    %p24 = scmp.ge.s32.totalorder %s23, 2
    %s25 = scalar_select %p24, 0, %s23
    %s26 = sadd.s32 1, %s17
    %s27 = scalar_select %p24, %s26, %s17
    %p28 = scmp.ge.s32.totalorder %s27, 1
    %s29 = scalar_select %p28, 0, %s27
    %s30 = ssub.s32 %s18, %s25
    %s31 = ssub.s32 %s17, %s29
    %s32 = sor.u32 %s30, %s31
    %p33 = scmp.eq.s32.totalorder %s32, 0
    %s35 = sadd.s32 %s34, 1
    %s36 = scalar_select %p33, %s34, %s35
    %p39 = pneg %p33
    %p40 = scmp.eq.s32.totalorder %s10, 1
    %p41 = por %p39, %p40
    %p42 = scmp.ne.s32.totalorder %s34, %s37
    %p43 = scmp.eq.s32.totalorder %s10, 0
    %p44 = por %p42, %p43
    %p45 = scmp.ne.s32.totalorder %s34, %s37
    %p46 = scmp.eq.s32.totalorder %s15, 1
    %p47 = por %p45, %p46
    %p48 = scmp.ne.s32.totalorder %s37, %s38
    %p49 = scmp.eq.s32.totalorder %s15, 0
    %p50 = por %p48, %p49
    %p51 = scmp.ne.s32.totalorder %s37, %s38
    %p52 = scmp.eq.s32.totalorder %s16, 1
    %p53 = por %p51, %p52
    %p55 = scmp.ne.s32.totalorder %s38, %s54
    %p56 = scmp.eq.s32.totalorder %s16, 0
    %p57 = por %p55, %p56
    %s58 = ssub.s32 %s17, %s29
    %p59 = scmp.eq.s32.totalorder %s58, 0
    %s61 = sadd.s32 %s60, 1
    %s62 = scalar_select %p59, %s60, %s61
    %p65 = pneg %p59
    %p66 = scmp.eq.s32.totalorder %s10, 1
    %p67 = por %p65, %p66
    %p68 = scmp.ne.s32.totalorder %s60, %s63
    %p69 = scmp.eq.s32.totalorder %s10, 0
    %p70 = por %p68, %p69
    %p71 = scmp.ne.s32.totalorder %s60, %s63
    %p72 = scmp.eq.s32.totalorder %s15, 1
    %p73 = por %p71, %p72
    %p74 = scmp.ne.s32.totalorder %s63, %s64
    %p75 = scmp.eq.s32.totalorder %s15, 0
    %p76 = por %p74, %p75
    %p77 = scmp.ne.s32.totalorder %s63, %s64
    %p78 = scmp.eq.s32.totalorder %s16, 1
    %p79 = por %p77, %p78
    %p81 = scmp.ne.s32.totalorder %s64, %s80
    %p82 = scmp.eq.s32.totalorder %s16, 0
    %p83 = por %p81, %p82
    %s84 = ssub.s32 %s17, %s29
    %p85 = scmp.eq.s32.totalorder %s84, 0
    %s87 = sadd.s32 %s86, 1
    %s88 = scalar_select %p85, %s86, %s87
    %p91 = pneg %p85
    %p92 = scmp.eq.s32.totalorder %s10, 1
    %p93 = por %p91, %p92
    %p94 = scmp.ne.s32.totalorder %s86, %s89
    %p95 = scmp.eq.s32.totalorder %s10, 0
    %p96 = por %p94, %p95
    %p97 = scmp.ne.s32.totalorder %s86, %s89
    %p98 = scmp.eq.s32.totalorder %s15, 1
    %p99 = por %p97, %p98
    %p100 = scmp.ne.s32.totalorder %s89, %s90
    %p101 = scmp.eq.s32.totalorder %s15, 0
    %p102 = por %p100, %p101
    %p103 = scmp.ne.s32.totalorder %s89, %s90
    %p104 = scmp.eq.s32.totalorder %s16, 1
    %p105 = por %p103, %p104
    %p107 = scmp.ne.s32.totalorder %s90, %s106
    %p108 = scmp.eq.s32.totalorder %s16, 0
    %p109 = por %p107, %p108
    %s110 = ssub.s32 %s18, %s25
    %s111 = ssub.s32 %s17, %s29
    %s112 = sor.u32 %s110, %s111
    %p113 = scmp.eq.s32.totalorder %s112, 0
    %s115 = sadd.s32 %s114, 1
    %s116 = scalar_select %p113, %s114, %s115
    %p119 = pneg %p113
    %p120 = scmp.eq.s32.totalorder %s10, 1
    %p121 = por %p119, %p120
    %p122 = scmp.ne.s32.totalorder %s114, %s117
    %p123 = scmp.eq.s32.totalorder %s10, 0
    %p124 = por %p122, %p123
    %p125 = scmp.ne.s32.totalorder %s114, %s117
    %p126 = scmp.eq.s32.totalorder %s15, 1
    %p127 = por %p125, %p126
    %p128 = scmp.ne.s32.totalorder %s117, %s118
    %p129 = scmp.eq.s32.totalorder %s15, 0
    %p130 = por %p128, %p129
    %p131 = scmp.ne.s32.totalorder %s117, %s118
    %p132 = scmp.eq.s32.totalorder %s16, 1
    %p133 = por %p131, %p132
    %p135 = scmp.ne.s32.totalorder %s118, %s134
    %p136 = scmp.eq.s32.totalorder %s16, 0
    %p137 = por %p135, %p136
    %s138 = ssub.s32 %s18, %s25
    %s139 = ssub.s32 %s17, %s29
    %s140 = sor.u32 %s138, %s139
    %p141 = scmp.eq.s32.totalorder %s140, 0
    %s143 = sadd.s32 %s142, 1
    %s144 = scalar_select %p141, %s142, %s143
    %p147 = pneg %p141
    %p148 = scmp.eq.s32.totalorder %s10, 1
    %p149 = por %p147, %p148
    %p150 = scmp.ne.s32.totalorder %s142, %s145
    %p151 = scmp.eq.s32.totalorder %s10, 0
    %p152 = por %p150, %p151
    %p153 = scmp.ne.s32.totalorder %s142, %s145
    %p154 = scmp.eq.s32.totalorder %s15, 1
    %p155 = por %p153, %p154
    %p156 = scmp.ne.s32.totalorder %s145, %s146
    %p157 = scmp.eq.s32.totalorder %s15, 0
    %p158 = por %p156, %p157
    %p159 = scmp.ne.s32.totalorder %s145, %s146
    %p160 = scmp.eq.s32.totalorder %s16, 1
    %p161 = por %p159, %p160
    %p163 = scmp.ne.s32.totalorder %s146, %s162
    %p164 = scmp.eq.s32.totalorder %s16, 0
    %p165 = por %p163, %p164
    %p166 = scmp.le.s32.totalorder 1, %s10
    %p167 = scmp.lt.s32.totalorder %s10, 3
    %p168 = pnand %p166, %p167
    %p169 = pneg %p168
    // Predicated region
    $region9: #{modified_shift_gcn_forward.3} parent=5 // pred_check
      _
    $region10: #{modified_shift_gcn_forward.3} parent=5 // pred_check_branch
      %171 = sbr.rel (%p168) target = $region12
    $region11: #{modified_shift_gcn_forward.3} parent=5 // pred_region
      %s172 = ssub.s32 %s10, 1
      // Predicated region
      $region13: #{modified_shift_gcn_forward.3} parent=11 // pred_check
        %p173 = pneg %p76
      $region14: #{modified_shift_gcn_forward.3} parent=11 // pred_check_branch
        %175 = sbr.rel (%p173) target = $region16
      $region15: #{modified_shift_gcn_forward.3} parent=11 // pred_region
        %s176 = smul.u32 2, %s19
        %p177 = scmp.lt.s32.totalorder %s176, 1
        %s178 = scalar_select %p177, %s176, 1
        %s179 = smul.addr %s178, 8
        %s180 = scalar_lea.vmem %s1, %s179
        %s181 = smul.u32 2, %s19
      $region16: #{modified_shift_gcn_forward.3} parent=11 // pred_fallthru
        _
      // Predicated region
      $region17: #{modified_shift_gcn_forward.3} parent=11 // pred_check
        %p182 = pneg %p102
      $region18: #{modified_shift_gcn_forward.3} parent=11 // pred_check_branch
        %184 = sbr.rel (%p182) target = $region20
      $region19: #{modified_shift_gcn_forward.3} parent=11 // pred_region
        %s185 = smul.u32 2, %s19
        %p186 = scmp.lt.s32.totalorder %s185, 1
        %s187 = scalar_select %p186, %s185, 1
        %s188 = smul.addr %s187, 8
        %s189 = scalar_lea.vmem %s2, %s188
        %s190 = smul.u32 2, %s19
      $region20: #{modified_shift_gcn_forward.3} parent=11 // pred_fallthru
        _
    $region12: #{modified_shift_gcn_forward.3} parent=5 // pred_fallthru
      _
    %p191 = scmp.lt.s32.totalorder %s10, 2
    // Predicated region
    $region21: #{modified_shift_gcn_forward.3} parent=5 // pred_check
      %p192 = pneg %p191
    $region22: #{modified_shift_gcn_forward.3} parent=5 // pred_check_branch
      %194 = sbr.rel (%p192) target = $region24
    $region23: #{modified_shift_gcn_forward.3} parent=5 // pred_region
      // Predicated region
      $region25: #{modified_shift_gcn_forward.3} parent=23 // pred_check
        %p195 = pneg %p44
      $region26: #{modified_shift_gcn_forward.3} parent=23 // pred_check_branch
        %197 = sbr.rel (%p195) target = $region28
      $region27: #{modified_shift_gcn_forward.3} parent=23 // pred_region
        %s198 = smul.u32 2, %s17
        %p199 = scmp.lt.s32.totalorder %s18, 1
        %s200 = scalar_select %p199, %s18, 1
        %p201 = scmp.lt.s32.totalorder %s198, 1
        %s202 = scalar_select %p201, %s198, 1
        %s203 = smul.addr %s200, 2
        %s204 = sadd.s32 %s202, %s203
        %s205 = smul.addr %s204, 4
        %s206 = scalar_lea.vmem %s0, %s205
        %s207 = smul.u32 2, %s17
      $region28: #{modified_shift_gcn_forward.3} parent=23 // pred_fallthru
        _
      // Predicated region
      $region29: #{modified_shift_gcn_forward.3} parent=23 // pred_check
        %p208 = pneg %p124
      $region30: #{modified_shift_gcn_forward.3} parent=23 // pred_check_branch
        %210 = sbr.rel (%p208) target = $region32
      $region31: #{modified_shift_gcn_forward.3} parent=23 // pred_region
        %s211 = smul.u32 2, %s17
        %p212 = scmp.lt.s32.totalorder %s18, 1
        %s213 = scalar_select %p212, %s18, 1
        %p214 = scmp.lt.s32.totalorder %s211, 1
        %s215 = scalar_select %p214, %s211, 1
        %s216 = smul.addr %s213, 2
        %s217 = sadd.s32 %s215, %s216
        %s218 = smul.addr %s217, 8
        %s219 = scalar_lea.vmem %s3, %s218
        %s220 = smul.u32 2, %s17
      $region32: #{modified_shift_gcn_forward.3} parent=23 // pred_fallthru
        _
    $region24: #{modified_shift_gcn_forward.3} parent=5 // pred_fallthru
      _
    %p221 = scmp.le.s32.totalorder 1, %s10
    %p222 = scmp.lt.s32.totalorder %s10, 3
    %p223 = pnand %p221, %p222
    %p224 = pneg %p223
    // Predicated region
    $region33: #{modified_shift_gcn_forward.3} parent=5 // pred_check
      _
    $region34: #{modified_shift_gcn_forward.3} parent=5 // pred_check_branch
      %226 = sbr.rel (%p223) target = $region36
    $region35: #{modified_shift_gcn_forward.3} parent=5 // pred_region
      %s227 = ssub.s32 %s10, 1
      %s228 = smul.u32 2, %s19
      %p229 = scmp.lt.s32.totalorder %s20, 1
      %s230 = scalar_select %p229, %s20, 1
      %p231 = scmp.lt.s32.totalorder %s228, 1
      %s232 = scalar_select %p231, %s228, 1
      %s233 = smul.addr %s230, 2
      %s234 = sadd.s32 %s232, %s233
      %s235 = smul.addr %s234, 4
      %s236 = scalar_lea.vmem %s0, %s235
      %p237 = pneg %p50
      %p238 = pneg %p47
      %s239 = smul.u32 2, %s19
      %p240 = scmp.lt.s32.totalorder %s239, 1
      %s241 = scalar_select %p240, %s239, 1
      %s242 = smul.addr %s241, 8
      %s243 = scalar_lea.vmem %s1, %s242
      %p244 = pneg %p76
      %p245 = pneg %p73
      %s246 = smul.u32 2, %s19
      %p247 = scmp.lt.s32.totalorder %s246, 1
      %s248 = scalar_select %p247, %s246, 1
      %s249 = smul.addr %s248, 8
      %s250 = scalar_lea.vmem %s2, %s249
      %p251 = pneg %p102
      %p252 = pneg %p99
      %s253 = smul.u32 2, %s19
      %p254 = scmp.lt.s32.totalorder %s20, 1
      %s255 = scalar_select %p254, %s20, 1
      %p256 = scmp.lt.s32.totalorder %s253, 1
      %s257 = scalar_select %p256, %s253, 1
      %s258 = smul.addr %s255, 2
      %s259 = sadd.s32 %s257, %s258
      %s260 = smul.addr %s259, 8
      %s261 = scalar_lea.vmem %s3, %s260
      %p262 = pneg %p130
      %p263 = pneg %p127
      %p264 = pneg %p158
      %p265 = pneg %p155
      %s266 = smul.u32 2, %s19
      %p267 = scmp.lt.s32.totalorder %s20, 1
      %s268 = scalar_select %p267, %s20, 1
      %p269 = scmp.lt.s32.totalorder %s266, 1
      %s270 = scalar_select %p269, %s266, 1
      %s271 = smul.addr %s268, 2
      %s272 = sadd.s32 %s270, %s271
      %s273 = smul.addr %s272, 8
      %s274 = scalar_lea.vmem %s4, %s273
      %s275 = smul.u32 2, %s19
      %p276 = scmp.lt.s32.totalorder %s20, 1
      %s277 = scalar_select %p276, %s20, 1
      %p278 = scmp.lt.s32.totalorder %s275, 1
      %s279 = scalar_select %p278, %s275, 1
      %s280 = smul.addr %s277, 2
      %s281 = sadd.s32 %s279, %s280
      %s282 = smul.addr %s281, 4
      %s283 = scalar_lea.vmem %s0, %s282
      %s284 = smul.u32 2, %s19
      %s285 = smul.u32 2, %s19
      %p286 = scmp.lt.s32.totalorder %s285, 1
      %s287 = scalar_select %p286, %s285, 1
      %s288 = smul.addr %s287, 8
      %s289 = scalar_lea.vmem %s1, %s288
      %s290 = smul.u32 2, %s19
      %s291 = smul.u32 2, %s19
      %p292 = scmp.lt.s32.totalorder %s291, 1
      %s293 = scalar_select %p292, %s291, 1
      %s294 = smul.addr %s293, 8
      %s295 = scalar_lea.vmem %s2, %s294
      %s296 = smul.u32 2, %s19
      %s297 = smul.u32 2, %s19
      %p298 = scmp.lt.s32.totalorder %s20, 1
      %s299 = scalar_select %p298, %s20, 1
      %p300 = scmp.lt.s32.totalorder %s297, 1
      %s301 = scalar_select %p300, %s297, 1
      %s302 = smul.addr %s299, 2
      %s303 = sadd.s32 %s301, %s302
      %s304 = smul.addr %s303, 8
      %s305 = scalar_lea.vmem %s3, %s304
      %s306 = smul.u32 2, %s19
      %s307 = smul.u32 2, %s19
      %p308 = scmp.lt.s32.totalorder %s20, 1
      %s309 = scalar_select %p308, %s20, 1
      %p310 = scmp.lt.s32.totalorder %s307, 1
      %s311 = scalar_select %p310, %s307, 1
      %s312 = smul.addr %s309, 2
      %s313 = sadd.s32 %s311, %s312
      %s314 = smul.addr %s313, 8
      %s315 = scalar_lea.vmem %s4, %s314
      %s316 = smul.u32 2, %s19
      %v317 = vld [vmem:[%s283] sm:$0xf]
      %v318 = vld [vmem:[%s283 + $0x4] sm:$0xf]
      %v319 = vunpack.c.l.bf16 %v317
      %v320 = vunpack.c.l.bf16 %v318
      %v321 = vld [vmem:[%s289] sm:$0xff]
      %v322 = vld [vmem:[%s289 + $0x8] sm:$0xff]
      %v323 = vmul.f32 %v319, %v321
      %v324 = vmul.f32 %v320, %v322
      %v325 = vld [vmem:[%s295] sm:$0xff]
      %v326 = vld [vmem:[%s295 + $0x8] sm:$0xff]
      %v327 = vadd.f32 %v323, %v325
      %v328 = vadd.f32 %v324, %v326
      %v329 = vld [vmem:[%s305] sm:$0xff]
      %v330 = vld [vmem:[%s305 + $0x8] sm:$0xff]
      %v331 = vadd.f32 %v327, %v329
      %v332 = vadd.f32 %v328, %v330
      %v333 = vmax.f32 %v331, 0.0
      %v334 = vmax.f32 %v332, 0.0
      %vm335 = vcmask 523264
      %336 = vst.msk [vmem:[%s315] sm:$0xff] %vm335, %v333
      %337 = vst.msk [vmem:[%s315 + $0x8] sm:$0xff] %vm335, %v334
      %s338 = smul.u32 2, %s19
      %p339 = scmp.lt.s32.totalorder %s20, 1
      %s340 = scalar_select %p339, %s20, 1
      %p341 = scmp.lt.s32.totalorder %s338, 1
      %s342 = scalar_select %p341, %s338, 1
      %s343 = smul.addr %s340, 2
      %s344 = sadd.s32 %s342, %s343
      %s345 = smul.addr %s344, 8
      %s346 = scalar_lea.vmem %s4, %s345
      // Predicated region
      $region37: #{modified_shift_gcn_forward.3} parent=35 // pred_check
        %p347 = pneg %p155
      $region38: #{modified_shift_gcn_forward.3} parent=35 // pred_check_branch
        %349 = sbr.rel (%p347) target = $region40
      $region39: #{modified_shift_gcn_forward.3} parent=35 // pred_region
        %s350 = smul.u32 2, %s19
      $region40: #{modified_shift_gcn_forward.3} parent=35 // pred_fallthru
        _
    $region36: #{modified_shift_gcn_forward.3} parent=5 // pred_fallthru
      _
    %p351 = scmp.le.s32.totalorder 2, %s10
    // Predicated region
    $region41: #{modified_shift_gcn_forward.3} parent=5 // pred_check
      %p352 = pneg %p351
    $region42: #{modified_shift_gcn_forward.3} parent=5 // pred_check_branch
      %354 = sbr.rel (%p352) target = $region44
    $region43: #{modified_shift_gcn_forward.3} parent=5 // pred_region
      %s355 = ssub.s32 %s10, 2
      // Predicated region
      $region45: #{modified_shift_gcn_forward.3} parent=43 // pred_check
        %p356 = pneg %p161
      $region46: #{modified_shift_gcn_forward.3} parent=43 // pred_check_branch
        %358 = sbr.rel (%p356) target = $region48
      $region47: #{modified_shift_gcn_forward.3} parent=43 // pred_region
        %s359 = smul.u32 2, %s21
        %p360 = scmp.lt.s32.totalorder %s22, 1
        %s361 = scalar_select %p360, %s22, 1
        %p362 = scmp.lt.s32.totalorder %s359, 1
        %s363 = scalar_select %p362, %s359, 1
        %s364 = smul.addr %s361, 2
        %s365 = sadd.s32 %s363, %s364
        %s366 = smul.addr %s365, 8
        %s367 = scalar_lea.vmem %s4, %s366
      $region48: #{modified_shift_gcn_forward.3} parent=43 // pred_fallthru
        _
    $region44: #{modified_shift_gcn_forward.3} parent=5 // pred_fallthru
      _
  $region6: #{modified_shift_gcn_forward.3} parent=0 // loop_footer
    %s14 = sadd.s32 1, %s10
  $region7: #{modified_shift_gcn_forward.3} parent=0 // loop_footer_branch
    %9 = sbr.rel target = $region3
  $region8: #{modified_shift_gcn_forward.3} parent=0 // loop_exit
    _

</llo_original>
